<compile_context>
chip_gen: v6e
topology: v6e:2x2x1
jax: 0.10.0
libtpu: 0.0.40
codegen_flags: <defaults>
</compile_context>

<pallas_src>
import jax
import jax.numpy as jnp
from jax.experimental import pallas as pl
from jax.experimental.pallas import tpu as pltpu


def _round_up(x, m):
    return ((x + m - 1) // m) * m


def _gated_conv_kernel_single(p_ref, w_ref, b_ref, o_ref):
    # Single K step: p_ref (K, tm), w_ref (C_out+1, K), b_ref (C_out+1, 1),
    # o_ref (C_out, tm). One fused MXU matmul, f32 tail, lane-dense store.
    c_out = o_ref.shape[0]
    acc = jnp.dot(w_ref[...], p_ref[...],
                  preferred_element_type=jnp.float32) + b_ref[...]
    conv = acc[:c_out]                         # (C_out, tm)
    gate = jax.nn.sigmoid(acc[c_out:])         # (1, tm) f32 sigmoid on EUP
    o_ref[...] = (conv * gate).astype(o_ref.dtype)


def _gated_conv_kernel_multi(p_ref, w_ref, b_ref, o_ref, acc_ref):
    # p_ref  : (tk, tm)        K-major patch tile (lane axis = tm)
    # w_ref  : (C_out+1, tk)   fused [conv; gate] weights
    # b_ref  : (C_out+1, 1)    fused [conv; gate] bias (f32)
    # o_ref  : (C_out, tm)     gated output tile (lane-dense)
    # acc_ref: (C_out+1, tm)   f32 accumulator, resident across the K axis
    k = pl.program_id(1)

    @pl.when(k == 0)
    def _():
        acc_ref[...] = jnp.zeros_like(acc_ref)

    acc_ref[...] += jnp.dot(w_ref[...], p_ref[...],
                            preferred_element_type=jnp.float32)

    @pl.when(k == pl.num_programs(1) - 1)
    def _():
        c_out = o_ref.shape[0]
        acc = acc_ref[...] + b_ref[...]
        conv = acc[:c_out]
        gate = jax.nn.sigmoid(acc[c_out:])
        o_ref[...] = (conv * gate).astype(o_ref.dtype)


def _im2col_t(x, kh, kw, stride, padding, dilation):
    """x: (N, C, H, W) -> K-major patches (C*KH*KW, N*OH*OW), plus (OH, OW).

    The (cheap, un-inflated) input is transposed to channel-major first so
    the stacked taps land directly in (C, KH*KW, N, OH, OW) order and the
    final (K, M) layout is a pure reshape -- no transpose of the KH*KW-
    inflated array.
    """
    N, C, H, W = x.shape
    OH = (H + 2 * padding - dilation * (kh - 1) - 1) // stride + 1
    OW = (W + 2 * padding - dilation * (kw - 1) - 1) // stride + 1
    xp = jnp.pad(x, ((0, 0), (0, 0), (padding, padding), (padding, padding)))
    xp = jnp.transpose(xp, (1, 0, 2, 3))          # (C, N, Hp, Wp), small
    slabs = []
    for ih in range(kh):
        for iw in range(kw):
            h0 = ih * dilation
            w0 = iw * dilation
            slabs.append(xp[:, :,
                            h0: h0 + stride * (OH - 1) + 1: stride,
                            w0: w0 + stride * (OW - 1) + 1: stride])
    # (C, KH*KW, N, OH, OW) -> (K, M)   (pure reshape)
    patches = jnp.stack(slabs, axis=1).reshape(C * kh * kw, N * OH * OW)
    return patches, OH, OW


def gated_conv2d(x, w_conv, b_conv, w_gate, b_gate,
                 stride=1, padding=0, dilation=1, tm=512, tk_max=2048):
    """Gated conv forward.

    x      : (N, C_in, H, W)
    w_conv : (C_out, C_in, KH, KW), b_conv: (C_out,)
    w_gate : (1,     C_in, KH, KW), b_gate: (1,)
    returns: (N, C_out, OH, OW) = conv(x) * sigmoid(gate_conv(x))
    """
    N, C_in, H, W = x.shape
    C_out, _, KH, KW = w_conv.shape
    dtype = x.dtype
    itemsize = jnp.dtype(dtype).itemsize

    patches, OH, OW = _im2col_t(x, KH, KW, stride, padding, dilation)
    K, M = patches.shape
    C1 = C_out + 1

    # Fused [conv; gate] weight (C_out+1, K) and bias (C_out+1, 1). Streamed
    # operands keep the input dtype; bias stays f32 (f32 tail math).
    w_fused = jnp.concatenate(
        [w_conv.reshape(C_out, K), w_gate.reshape(1, K)], axis=0).astype(dtype)
    b_fused = jnp.concatenate(
        [b_conv.reshape(C_out), b_gate.reshape(1)], axis=0
    ).reshape(C1, 1).astype(jnp.float32)

    # ---- K tiling ----------------------------------------------------------
    # Single step if K is modest; otherwise split into n_k near-equal,
    # 128-aligned tiles (lane dim of the weight tile must be a multiple of
    # 128) to minimise padded-K waste.
    if K <= tk_max:
        tk, K_pad, k_steps = K, K, 1
    else:
        k_steps = -(-K // tk_max)
        tk = _round_up(-(-K // k_steps), 128)
        K_pad = k_steps * tk

    # ---- M tiling ----------------------------------------------------------
    # Lane-dense tiles, largest fitting a conservative per-step VMEM budget
    # that is safe on every generation (v5e/v6e 128 MiB, v7x 64 MiB).
    tm = _round_up(max(128, tm), 128)
    tm = min(tm, _round_up(M, 128))
    vmem_budget = 24 * 2 ** 20

    def vmem_est(tm_):
        return (2 * tk * tm_ * itemsize          # double-buffered patch tiles
                + 2 * C1 * tk * itemsize         # fused weights
                + C1 * tm_ * 4                   # f32 accumulator scratch
                + 2 * C_out * tm_ * itemsize     # output tiles
                + C1 * 4 + 4096)                 # bias + slack

    while tm > 128 and vmem_est(tm) > vmem_budget:
        tm //= 2
    M_pad = _round_up(M, tm)

    if (K_pad, M_pad) != (K, M):
        patches = jnp.pad(patches, ((0, K_pad - K), (0, M_pad - M)))
    if K_pad != K:
        w_fused = jnp.pad(w_fused, ((0, 0), (0, K_pad - K)))

    vmem_limit = None
    if vmem_est(tm) > 12 * 2 ** 20:              # above tightest scoped default
        vmem_limit = min(2 * vmem_est(tm), 48 * 2 ** 20)

    if k_steps == 1:
        # Fast path: 1-D grid over M, no accumulator scratch, no phase gates.
        out = pl.pallas_call(
            _gated_conv_kernel_single,
            out_shape=jax.ShapeDtypeStruct((C_out, M_pad), dtype),
            grid=(M_pad // tm,),
            in_specs=[
                pl.BlockSpec((tk, tm), lambda i: (0, i)),   # patches (K-major)
                pl.BlockSpec((C1, tk), lambda i: (0, 0)),   # fused weights
                pl.BlockSpec((C1, 1), lambda i: (0, 0)),    # fused bias
            ],
            out_specs=pl.BlockSpec((C_out, tm), lambda i: (0, i)),
            compiler_params=pltpu.CompilerParams(
                dimension_semantics=("parallel",),
                vmem_limit_bytes=vmem_limit),
        )(patches, w_fused, b_fused)
    else:
        grid = (M_pad // tm, k_steps)            # reduction axis (K) last
        out = pl.pallas_call(
            _gated_conv_kernel_multi,
            out_shape=jax.ShapeDtypeStruct((C_out, M_pad), dtype),
            grid=grid,
            in_specs=[
                pl.BlockSpec((tk, tm), lambda i, k: (k, i)),   # patches
                pl.BlockSpec((C1, tk), lambda i, k: (0, k)),   # fused weights
                pl.BlockSpec((C1, 1), lambda i, k: (0, 0)),    # fused bias
            ],
            out_specs=pl.BlockSpec((C_out, tm), lambda i, k: (0, i)),
            scratch_shapes=[pltpu.VMEM((C1, tm), jnp.float32)],
            compiler_params=pltpu.CompilerParams(
                dimension_semantics=("parallel", "arbitrary"),
                vmem_limit_bytes=vmem_limit),
        )(patches, w_fused, b_fused)

    # Strip M padding (padded tail columns hold bias*sigmoid(bias) garbage)
    # and go back to NCHW.
    out = out[:, :M].reshape(C_out, N, OH, OW).transpose(1, 0, 2, 3)
    return out


def _reference(x, w_conv, b_conv, w_gate, b_gate, stride, padding, dilation):
    dn = jax.lax.conv_dimension_numbers(x.shape, w_conv.shape,
                                        ("NCHW", "OIHW", "NCHW"))
    conv = jax.lax.conv_general_dilated(
        x, w_conv, (stride, stride), [(padding, padding)] * 2,
        rhs_dilation=(dilation, dilation), dimension_numbers=dn)
    conv = conv + b_conv.reshape(1, -1, 1, 1)
    gate = jax.lax.conv_general_dilated(
        x, w_gate, (stride, stride), [(padding, padding)] * 2,
        rhs_dilation=(dilation, dilation), dimension_numbers=dn)
    gate = gate + b_gate.reshape(1, -1, 1, 1)
    return conv * jax.nn.sigmoid(gate)


if __name__ == "__main__":
    # Small shapes consistent with GatedConv2d(in_channels=4, out_channels=8,
    # kernel_size=3, stride=1, padding=1, dilation=1, bias=True)
    N, C_in, H, W = 2, 4, 16, 16
    C_out, ksize, stride, padding, dilation = 8, 3, 1, 1, 1

    key = jax.random.PRNGKey(0)
    kx, kwc, kbc, kwg, kbg = jax.random.split(key, 5)
    x = jax.random.normal(kx, (N, C_in, H, W), dtype=jnp.float32)
    w_conv = 0.1 * jax.random.normal(kwc, (C_out, ksize * ksize * C_in,)
                                     .__class__((C_out, C_in, ksize, ksize)) if False
                                     else (C_out, C_in, ksize, ksize), jnp.float32)
    b_conv = 0.1 * jax.random.normal(kbc, (C_out,), jnp.float32)
    w_gate = 0.1 * jax.random.normal(kwg, (1, C_in, ksize, ksize), jnp.float32)
    b_gate = 0.1 * jax.random.normal(kbg, (1,), jnp.float32)

    ref = _reference(x, w_conv, b_conv, w_gate, b_gate, stride, padding, dilation)

    # Path 1: single-K-step fast path (K = 36 <= tk_max).
    out = gated_conv2d(x, w_conv, b_conv, w_gate, b_gate,
                       stride=stride, padding=padding, dilation=dilation)
    out = jax.block_until_ready(out)
    assert out.shape == ref.shape, (out.shape, ref.shape)
    max_err = float(jnp.max(jnp.abs(out - ref)))
    assert max_err < 2e-4, max_err

    # Path 2: force K tiling (accumulator path) with a tiny tk_max.
    out2 = gated_conv2d(x, w_conv, b_conv, w_gate, b_gate,
                        stride=stride, padding=padding, dilation=dilation,
                        tk_max=16)
    out2 = jax.block_until_ready(out2)
    max_err2 = float(jnp.max(jnp.abs(out2 - ref)))
    assert max_err2 < 2e-4, max_err2

    print("KERNEL_OK")
</pallas_src>

<mosaic_0001>
module attributes {stable_mosaic.version = 11 : i64} {
  func.func @_gated_conv_kernel_single(%arg0: i32, %arg1: memref<36x512xf32, #tpu.memory_space<vmem>>, %arg2: memref<9x36xf32, #tpu.memory_space<vmem>>, %arg3: memref<9x1xf32, #tpu.memory_space<vmem>>, %arg4: memref<8x512xf32, #tpu.memory_space<vmem>>) attributes {dimension_semantics = [#tpu.dimension_semantics<parallel>], iteration_bounds = array<i64: 1>, scalar_prefetch = 0 : i64, scratch_operands = 0 : i64, tpu.core_type = #tpu.core_type<tc>, window_params = [{transform_indices = @transform_0, window_bounds = array<i64: 36, 512>}, {pipeline_mode = #tpu.pipeline_mode<synchronous>, transform_indices = @transform_1, window_bounds = array<i64: 9, 36>}, {pipeline_mode = #tpu.pipeline_mode<synchronous>, transform_indices = @transform_2, window_bounds = array<i64: 9, 1>}, {transform_indices = @transform_3, window_bounds = array<i64: 8, 512>}]} {
    %c0 = arith.constant 0 : index
    %c0_0 = arith.constant 0 : index
    %0 = vector.load %arg2[%c0, %c0_0] : memref<9x36xf32, #tpu.memory_space<vmem>>, vector<9x36xf32>
    %c0_1 = arith.constant 0 : index
    %c0_2 = arith.constant 0 : index
    %1 = vector.load %arg1[%c0_1, %c0_2] : memref<36x512xf32, #tpu.memory_space<vmem>>, vector<36x512xf32>
    %cst = arith.constant dense<0.000000e+00> : vector<9x512xf32>
    %2 = tpu.matmul %0, %1, %cst {dimension_numbers = #tpu.dot_dimension_numbers<[1], [0], [0], [1], [0, 0, 1, 1], [], []>} : vector<9x36xf32>, vector<36x512xf32>, vector<9x512xf32> -> vector<9x512xf32>
    %c0_3 = arith.constant 0 : index
    %c0_4 = arith.constant 0 : index
    %3 = vector.load %arg3[%c0_3, %c0_4] : memref<9x1xf32, #tpu.memory_space<vmem>>, vector<9x1xf32>
    %4 = vector.broadcast %3 : vector<9x1xf32> to vector<9x512xf32>
    %5 = arith.addf %2, %4 : vector<9x512xf32>
    %6 = vector.extract_strided_slice %5 {offsets = [0, 0], sizes = [8, 512], strides = [1, 1]} : vector<9x512xf32> to vector<8x512xf32>
    %7 = vector.extract_strided_slice %5 {offsets = [8, 0], sizes = [1, 512], strides = [1, 1]} : vector<9x512xf32> to vector<1x512xf32>
    %8 = arith.negf %7 : vector<1x512xf32>
    %9 = math.exp %8 : vector<1x512xf32>
    %cst_5 = arith.constant 1.000000e+00 : f32
    %10 = vector.broadcast %cst_5 : f32 to vector<1x512xf32>
    %11 = arith.addf %10, %9 : vector<1x512xf32>
    %12 = arith.divf %10, %11 : vector<1x512xf32>
    %13 = vector.broadcast %12 : vector<1x512xf32> to vector<8x512xf32>
    %14 = arith.mulf %6, %13 : vector<8x512xf32>
    %c0_6 = arith.constant 0 : index
    %c0_7 = arith.constant 0 : index
    %15 = vector.load %arg4[%c0_6, %c0_7] : memref<8x512xf32, #tpu.memory_space<vmem>>, vector<8x512xf32>
    tpu.vector_store %arg4[%c0_6, %c0_7], %14 {strides = array<i32>} : memref<8x512xf32, #tpu.memory_space<vmem>>, vector<8x512xf32>,
    return
  }
  func.func @transform_0(%arg0: i32) -> (i32, i32) {
    %c0_i32 = arith.constant 0 : i32
    %c0_i32_0 = arith.constant 0 : i32
    return %c0_i32, %arg0 : i32, i32
  }
  func.func @transform_1(%arg0: i32) -> (i32, i32) {
    %c0_i32 = arith.constant 0 : i32
    %c0_i32_0 = arith.constant 0 : i32
    %c0_i32_1 = arith.constant 0 : i32
    return %c0_i32, %c0_i32_0 : i32, i32
  }
  func.func @transform_2(%arg0: i32) -> (i32, i32) {
    %c0_i32 = arith.constant 0 : i32
    %c0_i32_0 = arith.constant 0 : i32
    %c0_i32_1 = arith.constant 0 : i32
    return %c0_i32, %c0_i32_0 : i32, i32
  }
  func.func @transform_3(%arg0: i32) -> (i32, i32) {
    %c0_i32 = arith.constant 0 : i32
    %c0_i32_0 = arith.constant 0 : i32
    return %c0_i32, %arg0 : i32, i32
  }
}

</mosaic_0001>

<llo_original>
// kernel: tpu_custom_call.1
$region0: #{tpu_custom_call.1}
  #allocation0 [shape = 'u32[]', space=smem, size = 0x4, offset = 0x4, fixed_abs, tag = 'smem constant byte address 0x4 - core index']
  #allocation1 [shape = 'u32[144,128]{1,0:T(1,128)}', space=vmem, size = 0x12000, scoped, tag = 'internal scratch']
  %s0 = inlined_call_operand.hbm [shape: f32[36,512], index: 0, kind: input, shape index: {}]
  %s1 = inlined_call_operand.vmem [shape: f32[9,36], index: 1, kind: input, shape index: {}]
  %s2 = inlined_call_operand.vmem [shape: f32[9,1], index: 2, kind: input, shape index: {}]
  %s3 = inlined_call_operand.hbm [shape: f32[8,512], index: 3, kind: output, shape index: {}]
  %s4 = sld [smem:[#allocation0]]
  $region26: #{tpu_custom_call.1} parent=0
    _
  %s6 = ssub.s32 1, %s4
  %s7 = scalar_select 0, %s6, %s4
  $region1: #{tpu_custom_call.1} parent=0
    #allocation2 [shape = 'u8[81920]{0}', space=vmem, size = 0x14000, scoped, tag = 'input window, operand 0, single buffered']
    #allocation3 [shape = 's32[1]{0}', space=sflag, size = 0x4, scoped, tag = 'scoped memory for tpu_custom_call.1']
    #allocation4 [shape = 's32[1]{0}', space=sflag, size = 0x4, scoped, tag = 'scoped memory for tpu_custom_call.1']
    #allocation5 [shape = 'u8[16384]{0}', space=vmem, size = 0x4000, scoped, tag = 'output window, operand 0, single buffered']
    %8 = vsyncpa [#allocation3], 0
    %9 = vsyncpa [#allocation4], 0
    // Predicated region
    $region2: #{tpu_custom_call.1} parent=1 // pred_check
      _
    $region3: #{tpu_custom_call.1} parent=1 // pred_check_branch
      %11 = sbr.rel (0) target = $region5
    $region4: #{tpu_custom_call.1} parent=1 // pred_region
      %s13 = ssub.s32 2560, 2560
      %14 = vsyncadd [#allocation3], %s13
      %s15 = sshll.u32 [#allocation2], 4
      %s16 = int_to_ptr.vmem [resolvable:$true] %s15
      %21 = dma.hbm_to_vmem [thread:$0]  %s0, 2560, %s16, [#allocation3], 512, 512, 32
    $region5: #{tpu_custom_call.1} parent=1 // pred_fallthru
      _
    // Predicated region
    $region6: #{tpu_custom_call.1} parent=1 // pred_check
      _
    $region7: #{tpu_custom_call.1} parent=1 // pred_check_branch
      %23 = sbr.rel (0) target = $region9
    $region8: #{tpu_custom_call.1} parent=1 // pred_region
      _
    $region9: #{tpu_custom_call.1} parent=1 // pred_fallthru
      _
    // Predicated region
    $region10: #{tpu_custom_call.1} parent=1 // pred_check
      _
    $region11: #{tpu_custom_call.1} parent=1 // pred_check_branch
      %25 = sbr.rel (0) target = $region13
    $region12: #{tpu_custom_call.1} parent=1 // pred_region
      _
    $region13: #{tpu_custom_call.1} parent=1 // pred_fallthru
      _
    // Predicated region
    $region14: #{tpu_custom_call.1} parent=1 // pred_check
      _
    $region15: #{tpu_custom_call.1} parent=1 // pred_check_branch
      %27 = sbr.rel (0) target = $region17
    $region16: #{tpu_custom_call.1} parent=1 // pred_region
      %28 = dma.done [#allocation3], 2560
    $region17: #{tpu_custom_call.1} parent=1 // pred_fallthru
      _
    %v29 = vld [vmem:[%s1] sm:$0xff]
    %v30 = vld [vmem:[%s1 + $0x8] sm:$0x1]
    %v31 = vld [vmem:[#allocation2] sm:$0xff]
    %v32 = vld [vmem:[#allocation2 + $0x8] sm:$0xff]
    %v33 = vld [vmem:[#allocation2 + $0x10] sm:$0xff]
    %v34 = vld [vmem:[#allocation2 + $0x18] sm:$0xff]
    %v35 = vld [vmem:[#allocation2 + $0x20] sm:$0xff]
    %v36 = vld [vmem:[#allocation2 + $0x28] sm:$0xff]
    %v37 = vld [vmem:[#allocation2 + $0x30] sm:$0xff]
    %v38 = vld [vmem:[#allocation2 + $0x38] sm:$0xff]
    %v39 = vld [vmem:[#allocation2 + $0x40] sm:$0xff]
    %v40 = vld [vmem:[#allocation2 + $0x48] sm:$0xff]
    %v41 = vld [vmem:[#allocation2 + $0x50] sm:$0xff]
    %v42 = vld [vmem:[#allocation2 + $0x58] sm:$0xff]
    %v43 = vld [vmem:[#allocation2 + $0x60] sm:$0xff]
    %v44 = vld [vmem:[#allocation2 + $0x68] sm:$0xff]
    %v45 = vld [vmem:[#allocation2 + $0x70] sm:$0xff]
    %v46 = vld [vmem:[#allocation2 + $0x78] sm:$0xff]
    %v47 = vld [vmem:[#allocation2 + $0x80] sm:$0xf]
    %v48 = vld [vmem:[#allocation2 + $0x88] sm:$0xf]
    %v49 = vld [vmem:[#allocation2 + $0x90] sm:$0xf]
    %v50 = vld [vmem:[#allocation2 + $0x98] sm:$0xf]
    %v51 = vld [vmem:[%s2] sm:$0xff]
    %v52 = vld [vmem:[%s2 + $0x8] sm:$0x1]
    %54 = vset.pattern.permute.xlu0 0
    %55 = vperm.xlu0 %54, %v51
    %v56 = vpop.permute.xlu0 %55
    %59 = vset.pattern.permute.xlu0 0
    %60 = vperm.xlu0 %59, %v52
    %v61 = vpop.permute.xlu0 %60
    %vm63 = vcmask 293888
    %v65 = vsel %vm63, %v29, 0
    %v68 = vsel %vm63, %v30, 0
    %vm70 = vcmask 1043456
    %v72 = vsel %vm70, %v47, 0
    %v75 = vsel %vm70, %v48, 0
    %v78 = vsel %vm70, %v49, 0
    %v81 = vsel %vm70, %v50, 0
    %83 = vmatprep.subr.mxu0 0.0
    %84 = vmatpush1.msra.mxu0 0.0
    %85 = vmatprep.subr.mxu0 0.0
    %86 = vmatpush1.msra.mxu0 0.0
    %87 = vmatprep.subr.mxu0 0.0
    %88 = vmatpush1.msra.mxu0 0.0
    %89 = vmatprep.subr.mxu0 0.0
    %90 = vmatpush1.msra.mxu0 0.0
    %91 = vmatprep.subr.mxu0 0.0
    %92 = vmatpush1.msra.mxu0 0.0
    %93 = vmatprep.subr.mxu0 0.0
    %94 = vmatpush1.msra.mxu0 0.0
    %95 = vmatprep.subr.mxu0 0.0
    %96 = vmatpush1.msra.mxu0 0.0
    %97 = vmatprep.subr.mxu0 0.0
    %98 = vmatpush1.msra.mxu0 0.0
    %99 = vmatprep.subr.mxu0 0.0
    %100 = vmatpush1.msra.mxu0 0.0
    %101 = vmatprep.subr.mxu0 0.0
    %102 = vmatpush1.msra.mxu0 0.0
    %103 = vmatprep.subr.mxu0 0.0
    %104 = vmatpush1.msra.mxu0 0.0
    %105 = vmatprep.subr.mxu0 %v75
    %106 = vmatpush1.msra.mxu0 %v72
    %107 = vmatprep.subr.mxu0 %v44
    %108 = vmatpush1.msra.mxu0 %v43
    %109 = vmatprep.subr.mxu0 %v40
    %110 = vmatpush1.msra.mxu0 %v39
    %111 = vmatprep.subr.mxu0 %v36
    %112 = vmatpush1.msra.mxu0 %v35
    %113 = vmatprep.subr.mxu0 %v32
    %114 = vmatpush1.msra.mxu0 %v31
    %115 = vmatprep.subr.mxu0 0.0
    %116 = vmatpush2.msra.mxu0 0.0
    %117 = vmatprep.subr.mxu0 0.0
    %118 = vmatpush2.msra.mxu0 0.0
    %119 = vmatprep.subr.mxu0 0.0
    %120 = vmatpush2.msra.mxu0 0.0
    %121 = vmatprep.subr.mxu0 0.0
    %122 = vmatpush2.msra.mxu0 0.0
    %123 = vmatprep.subr.mxu0 0.0
    %124 = vmatpush2.msra.mxu0 0.0
    %125 = vmatprep.subr.mxu0 0.0
    %126 = vmatpush2.msra.mxu0 0.0
    %127 = vmatprep.subr.mxu0 0.0
    %128 = vmatpush2.msra.mxu0 0.0
    %129 = vmatprep.subr.mxu0 0.0
    %130 = vmatpush2.msra.mxu0 0.0
    %131 = vmatprep.subr.mxu0 0.0
    %132 = vmatpush2.msra.mxu0 0.0
    %133 = vmatprep.subr.mxu0 0.0
    %134 = vmatpush2.msra.mxu0 0.0
    %135 = vmatprep.subr.mxu0 0.0
    %136 = vmatpush2.msra.mxu0 0.0
    %137 = vmatprep.subr.mxu0 0.0
    %138 = vmatpush2.msra.mxu0 0.0
    %139 = vmatprep.subr.mxu0 0.0
    %140 = vmatpush2.msra.mxu0 0.0
    %141 = vmatprep.subr.mxu0 0.0
    %142 = vmatpush2.msra.mxu0 0.0
    %143 = vmatprep.subr.mxu0 0.0
    %144 = vmatpush2.msra.mxu0 0.0
    %145 = vmatprep.subr.mxu0 0.0
    %146 = vmatpush2.msra.mxu0 0.0
    %147 = vmatprep.mubr.f32.mxu0 0.0
    %148 = vmatmul.mubr.f32.gmra.mxu0 %v65
    %v149 = vpop.f32.mrf.mxu0
    %v150 = vadd.f32 %v56, %v149
    %v151 = vpop.f32.mrf.mxu0
    %v152 = vadd.f32 %v56, %v151
    %153 = vmatprep.mubr.f32.mxu0 0.0
    %154 = vmatmul.mubr.f32.gmra.mxu0 %v68
    %v155 = vpop.f32.mrf.mxu0
    %v156 = vadd.f32 %v61, %v155
    %v157 = vpop.f32.mrf.mxu0
    %v158 = vadd.f32 %v61, %v157
    %159 = vdwg.mxu0
    %160 = vmatprep.subr.mxu0 0.0
    %161 = vmatpush1.msra.mxu0 0.0
    %162 = vmatprep.subr.mxu0 0.0
    %163 = vmatpush1.msra.mxu0 0.0
    %164 = vmatprep.subr.mxu0 0.0
    %165 = vmatpush1.msra.mxu0 0.0
    %166 = vmatprep.subr.mxu0 0.0
    %167 = vmatpush1.msra.mxu0 0.0
    %168 = vmatprep.subr.mxu0 0.0
    %169 = vmatpush1.msra.mxu0 0.0
    %170 = vmatprep.subr.mxu0 0.0
    %171 = vmatpush1.msra.mxu0 0.0
    %172 = vmatprep.subr.mxu0 0.0
    %173 = vmatpush1.msra.mxu0 0.0
    %174 = vmatprep.subr.mxu0 0.0
    %175 = vmatpush1.msra.mxu0 0.0
    %176 = vmatprep.subr.mxu0 0.0
    %177 = vmatpush1.msra.mxu0 0.0
    %178 = vmatprep.subr.mxu0 0.0
    %179 = vmatpush1.msra.mxu0 0.0
    %180 = vmatprep.subr.mxu0 0.0
    %181 = vmatpush1.msra.mxu0 0.0
    %182 = vmatprep.subr.mxu0 %v81
    %183 = vmatpush1.msra.mxu0 %v78
    %184 = vmatprep.subr.mxu0 %v46
    %185 = vmatpush1.msra.mxu0 %v45
    %186 = vmatprep.subr.mxu0 %v42
    %187 = vmatpush1.msra.mxu0 %v41
    %188 = vmatprep.subr.mxu0 %v38
    %189 = vmatpush1.msra.mxu0 %v37
    %190 = vmatprep.subr.mxu0 %v34
    %191 = vmatpush1.msra.mxu0 %v33
    %192 = vmatprep.subr.mxu0 0.0
    %193 = vmatpush2.msra.mxu0 0.0
    %194 = vmatprep.subr.mxu0 0.0
    %195 = vmatpush2.msra.mxu0 0.0
    %196 = vmatprep.subr.mxu0 0.0
    %197 = vmatpush2.msra.mxu0 0.0
    %198 = vmatprep.subr.mxu0 0.0
    %199 = vmatpush2.msra.mxu0 0.0
    %200 = vmatprep.subr.mxu0 0.0
    %201 = vmatpush2.msra.mxu0 0.0
    %202 = vmatprep.subr.mxu0 0.0
    %203 = vmatpush2.msra.mxu0 0.0
    %204 = vmatprep.subr.mxu0 0.0
    %205 = vmatpush2.msra.mxu0 0.0
    %206 = vmatprep.subr.mxu0 0.0
    %207 = vmatpush2.msra.mxu0 0.0
    %208 = vmatprep.subr.mxu0 0.0
    %209 = vmatpush2.msra.mxu0 0.0
    %210 = vmatprep.subr.mxu0 0.0
    %211 = vmatpush2.msra.mxu0 0.0
    %212 = vmatprep.subr.mxu0 0.0
    %213 = vmatpush2.msra.mxu0 0.0
    %214 = vmatprep.subr.mxu0 0.0
    %215 = vmatpush2.msra.mxu0 0.0
    %216 = vmatprep.subr.mxu0 0.0
    %217 = vmatpush2.msra.mxu0 0.0
    %218 = vmatprep.subr.mxu0 0.0
    %219 = vmatpush2.msra.mxu0 0.0
    %220 = vmatprep.subr.mxu0 0.0
    %221 = vmatpush2.msra.mxu0 0.0
    %222 = vmatprep.subr.mxu0 0.0
    %223 = vmatpush2.msra.mxu0 0.0
    %224 = vmatprep.mubr.f32.mxu0 0.0
    %225 = vmatmul.mubr.f32.gmra.mxu0 %v65
    %v226 = vpop.f32.mrf.mxu0
    %v227 = vadd.f32 %v56, %v226
    %v228 = vpop.f32.mrf.mxu0
    %v229 = vadd.f32 %v56, %v228
    %230 = vmatprep.mubr.f32.mxu0 0.0
    %231 = vmatmul.mubr.f32.gmra.mxu0 %v68
    %v232 = vpop.f32.mrf.mxu0
    %v233 = vadd.f32 %v61, %v232
    %v234 = vpop.f32.mrf.mxu0
    %v235 = vadd.f32 %v61, %v234
    %236 = vdwg.mxu0
    %v237 = vxor.u32 %v156, 2147483648
    %v238 = vxor.u32 %v158, 2147483648
    %v239 = vxor.u32 %v233, 2147483648
    %v240 = vxor.u32 %v235, 2147483648
    %v241 = vmul.f32 %v237, 1.442695
    %v242 = vpow.pop %v241
    %v243 = vmul.f32 %v238, 1.442695
    %v244 = vpow.pop %v243
    %v245 = vmul.f32 %v239, 1.442695
    %v246 = vpow.pop %v245
    %v247 = vmul.f32 %v240, 1.442695
    %v248 = vpow.pop %v247
    %v249 = vadd.f32 %v242, 1.0
    %v250 = vadd.f32 %v244, 1.0
    %v251 = vadd.f32 %v246, 1.0
    %v252 = vadd.f32 %v248, 1.0
    %v253 = vrcp.pop %v249
    %v254 = vmul.f32 1.0, %v253
    %v255 = vrcp.pop %v250
    %v256 = vmul.f32 1.0, %v255
    %v257 = vrcp.pop %v251
    %v258 = vmul.f32 1.0, %v257
    %v259 = vrcp.pop %v252
    %v260 = vmul.f32 1.0, %v259
    %v261 = vlaneseq
    %v262 = vshrl.u32 %v261, 7
    %v263 = vsub.s32 0, %v262
    %v264 = vrot.slane %v254, %v263
    %v265 = vlaneseq
    %v266 = vshrl.u32 %v265, 7
    %v267 = vsub.s32 0, %v266
    %v268 = vrot.slane %v256, %v267
    %v269 = vlaneseq
    %v270 = vshrl.u32 %v269, 7
    %v271 = vsub.s32 0, %v270
    %v272 = vrot.slane %v258, %v271
    %v273 = vlaneseq
    %v274 = vshrl.u32 %v273, 7
    %v275 = vsub.s32 0, %v274
    %v276 = vrot.slane %v260, %v275
    %v277 = vmul.f32 %v150, %v264
    %v278 = vmul.f32 %v152, %v268
    %v279 = vmul.f32 %v227, %v272
    %v280 = vmul.f32 %v229, %v276
    %281 = vst [vmem:[#allocation5] sm:$0xff] %v277
    %282 = vst [vmem:[#allocation5 + $0x8] sm:$0xff] %v278
    %283 = vst [vmem:[#allocation5 + $0x10] sm:$0xff] %v279
    %284 = vst [vmem:[#allocation5 + $0x18] sm:$0xff] %v280
    // Predicated region
    $region18: #{tpu_custom_call.1} parent=1 // pred_check
      _
    $region19: #{tpu_custom_call.1} parent=1 // pred_check_branch
      %286 = sbr.rel (0) target = $region21
    $region20: #{tpu_custom_call.1} parent=1 // pred_region
      %s288 = ssub.s32 512, 512
      %289 = vsyncadd [#allocation4], %s288
      %s291 = sshll.u32 [#allocation5], 4
      %s292 = int_to_ptr.vmem [resolvable:$true] %s291
      %294 = dma.vmem_to_hbm [thread:$0]  %s292, 512, %s3, [#allocation4]
    $region21: #{tpu_custom_call.1} parent=1 // pred_fallthru
      _
    // Predicated region
    $region22: #{tpu_custom_call.1} parent=1 // pred_check
      _
    $region23: #{tpu_custom_call.1} parent=1 // pred_check_branch
      %296 = sbr.rel (0) target = $region25
    $region24: #{tpu_custom_call.1} parent=1 // pred_region
      %297 = dma.done [#allocation4], 512
    $region25: #{tpu_custom_call.1} parent=1 // pred_fallthru
      _
    %298 = vsyncpa [#allocation3], 1
    %299 = vsyncpa [#allocation4], 1

</llo_original>
